<compile_context>
chip_gen: v7x
topology: tpu7x:2x2x1
jax: 0.10.0
libtpu: 0.0.40
codegen_flags: <defaults>
</compile_context>

<pallas_src>
import math

import jax
import jax.numpy as jnp
from jax.experimental import pallas as pl
from jax.experimental.pallas import tpu as pltpu


# ----------------------------------------------------------------------------
# helpers
# ----------------------------------------------------------------------------
def _pick_tile(dim: int, pref: int) -> int:
    """Use `pref` if it evenly tiles `dim`, else fall back to the full dim."""
    return pref if dim % pref == 0 else dim


# ----------------------------------------------------------------------------
# LayerNorm kernel (affine, eps = 1e-5 like nn.LayerNorm)
# ----------------------------------------------------------------------------
def pallas_layernorm(x2d, gamma, beta, eps=1e-5):
    """x2d: (N, D); gamma/beta: (D,)."""
    N, D = x2d.shape
    tn = _pick_tile(N, 512)

    def kernel(x_ref, g_ref, b_ref, o_ref):
        xv = x_ref[...].astype(jnp.float32)
        mean = jnp.mean(xv, axis=-1, keepdims=True)
        cent = xv - mean
        var = jnp.mean(cent * cent, axis=-1, keepdims=True)
        inv = jax.lax.rsqrt(var + eps)
        out = cent * inv * g_ref[...].astype(jnp.float32) + b_ref[...].astype(jnp.float32)
        o_ref[...] = out.astype(o_ref.dtype)

    return pl.pallas_call(
        kernel,
        out_shape=jax.ShapeDtypeStruct((N, D), x2d.dtype),
        grid_spec=pltpu.PrefetchScalarGridSpec(
            num_scalar_prefetch=0,
            grid=(N // tn,),
            in_specs=[
                pl.BlockSpec((tn, D), lambda i: (i, 0)),
                pl.BlockSpec((1, D), lambda i: (0, 0)),
                pl.BlockSpec((1, D), lambda i: (0, 0)),
            ],
            out_specs=pl.BlockSpec((tn, D), lambda i: (i, 0)),
        ),
        compiler_params=pltpu.CompilerParams(dimension_semantics=("parallel",)),
    )(x2d, gamma.reshape(1, D), beta.reshape(1, D))


# ----------------------------------------------------------------------------
# Tiled matmul kernel with fused bias / ReLU / residual epilogue
# ----------------------------------------------------------------------------
def pallas_linear(x, w, bias=None, residual=None, activation=None):
    """x: (M, K) @ w: (K, N) [+ bias (N,)] [ReLU] [+ residual (M, N)]."""
    M, K = x.shape
    K2, N = w.shape
    assert K == K2
    tm = _pick_tile(M, 256)
    tn = _pick_tile(N, 256)
    tk = _pick_tile(K, 512)
    has_bias = bias is not None
    has_res = residual is not None

    def kernel(*refs):
        x_ref, w_ref = refs[0], refs[1]
        pos = 2
        b_ref = r_ref = None
        if has_bias:
            b_ref = refs[pos]; pos += 1
        if has_res:
            r_ref = refs[pos]; pos += 1
        o_ref, acc_ref = refs[pos], refs[pos + 1]

        k_id = pl.program_id(2)

        @pl.when(k_id == 0)
        def _():
            acc_ref[...] = jnp.zeros_like(acc_ref)

        acc_ref[...] += jnp.dot(x_ref[...], w_ref[...],
                                preferred_element_type=jnp.float32)

        @pl.when(k_id == pl.num_programs(2) - 1)
        def _():
            out = acc_ref[...]
            if has_bias:
                out = out + b_ref[...].astype(jnp.float32)
            if activation == "relu":
                out = jnp.maximum(out, 0.0)
            if has_res:
                out = out + r_ref[...].astype(jnp.float32)
            o_ref[...] = out.astype(o_ref.dtype)

    in_specs = [
        pl.BlockSpec((tm, tk), lambda i, j, k: (i, k)),
        pl.BlockSpec((tk, tn), lambda i, j, k: (k, j)),
    ]
    inputs = [x, w]
    if has_bias:
        in_specs.append(pl.BlockSpec((1, tn), lambda i, j, k: (0, j)))
        inputs.append(bias.reshape(1, N))
    if has_res:
        in_specs.append(pl.BlockSpec((tm, tn), lambda i, j, k: (i, j)))
        inputs.append(residual)

    return pl.pallas_call(
        kernel,
        out_shape=jax.ShapeDtypeStruct((M, N), x.dtype),
        grid_spec=pltpu.PrefetchScalarGridSpec(
            num_scalar_prefetch=0,
            grid=(M // tm, N // tn, K // tk),
            in_specs=in_specs,
            out_specs=pl.BlockSpec((tm, tn), lambda i, j, k: (i, j)),
            scratch_shapes=[pltpu.VMEM((tm, tn), jnp.float32)],
        ),
        compiler_params=pltpu.CompilerParams(
            dimension_semantics=("parallel", "parallel", "arbitrary")),
    )(*inputs)


# ----------------------------------------------------------------------------
# Multi-head attention kernel (one grid step per batch element, all heads)
# ----------------------------------------------------------------------------
def pallas_attention(q, k, v, mask_i32, out_dtype):
    """q: (B,H,Lq,Dh); k,v: (B,H,Lk,Dh); mask_i32: (B,Lq,Lk) (nonzero = masked).
       Returns (out (B,H,Lq,Dh), coverage (B,Lq,Lk) = mean over heads of probs)."""
    B, H, Lq, Dh = q.shape
    Lk = k.shape[2]
    scale = 1.0 / math.sqrt(Dh)
    inv_h = 1.0 / H

    def kernel(q_ref, k_ref, v_ref, m_ref, o_ref, cov_ref):
        qb = q_ref[0].astype(jnp.float32) * scale          # (H, Lq, Dh)
        kb = k_ref[0].astype(jnp.float32)                  # (H, Lk, Dh)
        vb = v_ref[0].astype(jnp.float32)
        scores = jnp.einsum('hqd,hkd->hqk', qb, kb,
                            preferred_element_type=jnp.float32)   # (H, Lq, Lk)
        masked = m_ref[0] != 0                                     # (Lq, Lk)
        scores = jnp.where(masked[None, :, :], -jnp.inf, scores)
        m_max = jnp.max(scores, axis=-1, keepdims=True)
        p = jnp.exp(scores - m_max)
        denom = jnp.sum(p, axis=-1, keepdims=True)
        attn = p / denom
        cov_ref[0] = (jnp.sum(attn, axis=0) * inv_h).astype(cov_ref.dtype)
        out = jnp.einsum('hqk,hkd->hqd', attn, vb,
                         preferred_element_type=jnp.float32)
        o_ref[0] = out.astype(o_ref.dtype)

    out, cov = pl.pallas_call(
        kernel,
        out_shape=(jax.ShapeDtypeStruct((B, H, Lq, Dh), out_dtype),
                   jax.ShapeDtypeStruct((B, Lq, Lk), jnp.float32)),
        grid_spec=pltpu.PrefetchScalarGridSpec(
            num_scalar_prefetch=0,
            grid=(B,),
            in_specs=[
                pl.BlockSpec((1, H, Lq, Dh), lambda b: (b, 0, 0, 0)),
                pl.BlockSpec((1, H, Lk, Dh), lambda b: (b, 0, 0, 0)),
                pl.BlockSpec((1, H, Lk, Dh), lambda b: (b, 0, 0, 0)),
                pl.BlockSpec((1, Lq, Lk), lambda b: (b, 0, 0)),
            ],
            out_specs=[
                pl.BlockSpec((1, H, Lq, Dh), lambda b: (b, 0, 0, 0)),
                pl.BlockSpec((1, Lq, Lk), lambda b: (b, 0, 0)),
            ],
        ),
        compiler_params=pltpu.CompilerParams(dimension_semantics=("parallel",)),
    )(q, k, v, mask_i32)
    return out, cov


# ----------------------------------------------------------------------------
# Full DecoderLayer forward (eval mode)
# ----------------------------------------------------------------------------
def decoder_layer_forward(params, x, context, mask_tgt, mask_src):
    """x: (Lq, B, D) time-major; context: (Ls, B, D);
       mask_tgt: (B, Lq, Lq), mask_src: (B, Lq, Ls), True/nonzero = masked."""
    Lq, B, D = x.shape
    Ls = context.shape[0]
    H = params["h"]
    Dh = D // H

    mask_tgt = jnp.broadcast_to(mask_tgt, (B, Lq, Lq)).astype(jnp.int32)
    mask_src = jnp.broadcast_to(mask_src, (B, Lq, Ls)).astype(jnp.int32)

    x2d = x.reshape(Lq * B, D)
    ctx2d = context.reshape(Ls * B, D)

    # ---- self-attention block: LN -> fused QKV -> attn -> out proj (+residual) ----
    q_in = pallas_layernorm(x2d, params["ln_attn_g"], params["ln_attn_b"])
    qkv = pallas_linear(q_in, params["w_qkv"])                   # (Lq*B, 3D)  (group_linear)
    qkv = qkv.reshape(Lq, B, 3, H, Dh)
    q = qkv[:, :, 0].transpose(1, 2, 0, 3)                       # (B, H, Lq, Dh)
    k = qkv[:, :, 1].transpose(1, 2, 0, 3)
    v = qkv[:, :, 2].transpose(1, 2, 0, 3)
    attn_out, _ = pallas_attention(q, k, v, mask_tgt, x.dtype)
    attn_out2d = attn_out.transpose(2, 0, 1, 3).reshape(Lq * B, D)
    x2d = pallas_linear(attn_out2d, params["w_o_self"], residual=x2d)

    # ---- cross-attention block: LN -> Q + fused KV(context) -> attn -> out proj ----
    q_in = pallas_layernorm(x2d, params["ln_src_g"], params["ln_src_b"])
    qp = pallas_linear(q_in, params["w_q_src"])                  # (Lq*B, D)
    kv = pallas_linear(ctx2d, params["w_kv_src"])                # (Ls*B, 2D)  (group_linear)
    q = qp.reshape(Lq, B, H, Dh).transpose(1, 2, 0, 3)
    kv = kv.reshape(Ls, B, 2, H, Dh)
    k = kv[:, :, 0].transpose(1, 2, 0, 3)
    v = kv[:, :, 1].transpose(1, 2, 0, 3)
    attn_out, coverage = pallas_attention(q, k, v, mask_src, x.dtype)
    attn_out2d = attn_out.transpose(2, 0, 1, 3).reshape(Lq * B, D)
    x2d = pallas_linear(attn_out2d, params["w_o_src"], residual=x2d)

    # ---- feed-forward block: LN -> linear+relu -> linear (+residual) ----
    h_in = pallas_layernorm(x2d, params["ln_ffn_g"], params["ln_ffn_b"])
    hid = pallas_linear(h_in, params["w_ff1"], bias=params["b_ff1"], activation="relu")
    x2d = pallas_linear(hid, params["w_ff2"], bias=params["b_ff2"], residual=x2d)

    return x2d.reshape(Lq, B, D), coverage


# ----------------------------------------------------------------------------
# Pure-JAX reference (mirrors the PyTorch math)
# ----------------------------------------------------------------------------
def reference_forward(params, x, context, mask_tgt, mask_src):
    H = params["h"]
    Lq, B, D = x.shape
    Ls = context.shape[0]
    Dh = D // H
    scale = Dh ** -0.5

    def ln(y, g, b, eps=1e-5):
        mu = jnp.mean(y, axis=-1, keepdims=True)
        c = y - mu
        var = jnp.mean(c * c, axis=-1, keepdims=True)
        return c * jax.lax.rsqrt(var + eps) * g + b

    def mha(q_in, k_in, v_in, wq, wk, wv, wo, mask):
        Lq_, Lk_ = q_in.shape[0], k_in.shape[0]
        q = (q_in @ wq).reshape(Lq_, B, H, Dh).transpose(1, 2, 0, 3)
        k = (k_in @ wk).reshape(Lk_, B, H, Dh).transpose(1, 2, 0, 3)
        v = (v_in @ wv).reshape(Lk_, B, H, Dh).transpose(1, 2, 0, 3)
        s = jnp.einsum('bhqd,bhkd->bhqk', q * scale, k)
        s = jnp.where(mask[:, None, :, :], -jnp.inf, s)
        p = jax.nn.softmax(s, axis=-1)
        cov = jnp.mean(p, axis=1)
        o = jnp.einsum('bhqk,bhkd->bhqd', p, v)
        o = o.transpose(2, 0, 1, 3).reshape(Lq_, B, D)
        return o @ wo, cov

    q = ln(x, params["ln_attn_g"], params["ln_attn_b"])
    wq, wk, wv = jnp.split(params["w_qkv"], 3, axis=1)
    o, _ = mha(q, q, q, wq, wk, wv, params["w_o_self"], mask_tgt)
    x = x + o

    q = ln(x, params["ln_src_g"], params["ln_src_b"])
    wk2, wv2 = jnp.split(params["w_kv_src"], 2, axis=1)
    o, cov = mha(q, context, context, params["w_q_src"], wk2, wv2, params["w_o_src"], mask_src)
    x = x + o

    h = ln(x, params["ln_ffn_g"], params["ln_ffn_b"])
    h = jnp.maximum(h @ params["w_ff1"] + params["b_ff1"], 0.0)
    x = x + (h @ params["w_ff2"] + params["b_ff2"])
    return x, cov


# ----------------------------------------------------------------------------
if __name__ == "__main__":
    B, Lq, Ls = 2, 8, 10
    D, H, Dff = 32, 4, 64
    dt = jnp.float32

    key = jax.random.PRNGKey(0)
    ks = jax.random.split(key, 12)
    sc = 0.125

    params = {
        "h": H,
        "w_qkv":    sc * jax.random.normal(ks[0], (D, 3 * D), dt),
        "w_o_self": sc * jax.random.normal(ks[1], (D, D), dt),
        "w_q_src":  sc * jax.random.normal(ks[2], (D, D), dt),
        "w_kv_src": sc * jax.random.normal(ks[3], (D, 2 * D), dt),
        "w_o_src":  sc * jax.random.normal(ks[4], (D, D), dt),
        "w_ff1":    sc * jax.random.normal(ks[5], (D, Dff), dt),
        "b_ff1":    0.05 * jax.random.normal(ks[6], (Dff,), dt),
        "w_ff2":    sc * jax.random.normal(ks[7], (Dff, D), dt),
        "b_ff2":    0.05 * jax.random.normal(ks[8], (D,), dt),
        "ln_attn_g": jnp.ones((D,), dt), "ln_attn_b": jnp.zeros((D,), dt),
        "ln_src_g":  jnp.ones((D,), dt), "ln_src_b":  jnp.zeros((D,), dt),
        "ln_ffn_g":  jnp.ones((D,), dt), "ln_ffn_b":  jnp.zeros((D,), dt),
    }

    x = jax.random.normal(ks[9], (Lq, B, D), dt)            # time-major (len_q, batch, d_model)
    context = jax.random.normal(ks[10], (Ls, B, D), dt)

    # causal self-attention mask (True = masked future position)
    mask_tgt = jnp.broadcast_to(jnp.triu(jnp.ones((Lq, Lq), dtype=bool), k=1), (B, Lq, Lq))
    # source padding mask: last 2 source positions masked for batch element 1
    src_pad = jnp.zeros((B, Ls), dtype=bool).at[1, Ls - 2:].set(True)
    mask_src = jnp.broadcast_to(src_pad[:, None, :], (B, Lq, Ls))

    out, coverage = decoder_layer_forward(params, x, context, mask_tgt, mask_src)
    out = jax.block_until_ready(out)
    coverage = jax.block_until_ready(coverage)

    ref_out, ref_cov = reference_forward(params, x, context, mask_tgt, mask_src)

    assert out.shape == (Lq, B, D)
    assert coverage.shape == (B, Lq, Ls)
    assert jnp.allclose(out, ref_out, atol=5e-3, rtol=5e-3), "output mismatch vs reference"
    assert jnp.allclose(coverage, ref_cov, atol=5e-3, rtol=5e-3), "coverage mismatch vs reference"

    print("KERNEL_OK")
</pallas_src>

<mosaic_0001>
module attributes {stable_mosaic.version = 11 : i64} {
  func.func @kernel(%arg0: i32, %arg1: memref<16x32xf32, #tpu.memory_space<vmem>>, %arg2: memref<1x32xf32, #tpu.memory_space<vmem>>, %arg3: memref<1x32xf32, #tpu.memory_space<vmem>>, %arg4: memref<16x32xf32, #tpu.memory_space<vmem>>) attributes {dimension_semantics = [#tpu.dimension_semantics<parallel>], iteration_bounds = array<i64: 1>, scalar_prefetch = 0 : i64, scratch_operands = 0 : i64, tpu.core_type = #tpu.core_type<tc>, window_params = [{transform_indices = @transform_0, window_bounds = array<i64: 16, 32>}, {pipeline_mode = #tpu.pipeline_mode<synchronous>, transform_indices = @transform_1, window_bounds = array<i64: 1, 32>}, {pipeline_mode = #tpu.pipeline_mode<synchronous>, transform_indices = @transform_2, window_bounds = array<i64: 1, 32>}, {transform_indices = @transform_3, window_bounds = array<i64: 16, 32>}]} {
    %c0 = arith.constant 0 : index
    %c0_0 = arith.constant 0 : index
    %0 = vector.load %arg1[%c0, %c0_0] : memref<16x32xf32, #tpu.memory_space<vmem>>, vector<16x32xf32>
    %cst = arith.constant dense<0.000000e+00> : vector<16xf32>
    %1 = vector.multi_reduction <add>, %0, %cst [1] : vector<16x32xf32> to vector<16xf32>
    %2 = vector.shape_cast %1 : vector<16xf32> to vector<16x1xf32>
    %cst_1 = arith.constant 3.200000e+01 : f32
    %3 = vector.broadcast %cst_1 : f32 to vector<16x1xf32>
    %4 = arith.divf %2, %3 : vector<16x1xf32>
    %5 = vector.broadcast %4 : vector<16x1xf32> to vector<16x32xf32>
    %6 = arith.subf %0, %5 : vector<16x32xf32>
    %7 = arith.mulf %6, %6 : vector<16x32xf32>
    %cst_2 = arith.constant dense<0.000000e+00> : vector<16xf32>
    %8 = vector.multi_reduction <add>, %7, %cst_2 [1] : vector<16x32xf32> to vector<16xf32>
    %9 = vector.shape_cast %8 : vector<16xf32> to vector<16x1xf32>
    %cst_3 = arith.constant 3.200000e+01 : f32
    %10 = vector.broadcast %cst_3 : f32 to vector<16x1xf32>
    %11 = arith.divf %9, %10 : vector<16x1xf32>
    %cst_4 = arith.constant 9.99999974E-6 : f32
    %12 = vector.broadcast %cst_4 : f32 to vector<16x1xf32>
    %13 = arith.addf %11, %12 : vector<16x1xf32>
    %14 = math.rsqrt %13 : vector<16x1xf32>
    %15 = vector.broadcast %14 : vector<16x1xf32> to vector<16x32xf32>
    %16 = arith.mulf %6, %15 : vector<16x32xf32>
    %c0_5 = arith.constant 0 : index
    %c0_6 = arith.constant 0 : index
    %17 = vector.load %arg2[%c0_5, %c0_6] : memref<1x32xf32, #tpu.memory_space<vmem>>, vector<1x32xf32>
    %18 = vector.broadcast %17 : vector<1x32xf32> to vector<16x32xf32>
    %19 = arith.mulf %16, %18 : vector<16x32xf32>
    %c0_7 = arith.constant 0 : index
    %c0_8 = arith.constant 0 : index
    %20 = vector.load %arg3[%c0_7, %c0_8] : memref<1x32xf32, #tpu.memory_space<vmem>>, vector<1x32xf32>
    %21 = vector.broadcast %20 : vector<1x32xf32> to vector<16x32xf32>
    %22 = arith.addf %19, %21 : vector<16x32xf32>
    %c0_9 = arith.constant 0 : index
    %c0_10 = arith.constant 0 : index
    %23 = vector.load %arg4[%c0_9, %c0_10] : memref<16x32xf32, #tpu.memory_space<vmem>>, vector<16x32xf32>
    tpu.vector_store %arg4[%c0_9, %c0_10], %22 {strides = array<i32>} : memref<16x32xf32, #tpu.memory_space<vmem>>, vector<16x32xf32>,
    return
  }
  func.func @transform_0(%arg0: i32) -> (i32, i32) {
    %c0_i32 = arith.constant 0 : i32
    %c0_i32_0 = arith.constant 0 : i32
    return %arg0, %c0_i32 : i32, i32
  }
  func.func @transform_1(%arg0: i32) -> (i32, i32) {
    %c0_i32 = arith.constant 0 : i32
    %c0_i32_0 = arith.constant 0 : i32
    %c0_i32_1 = arith.constant 0 : i32
    return %c0_i32, %c0_i32_0 : i32, i32
  }
  func.func @transform_2(%arg0: i32) -> (i32, i32) {
    %c0_i32 = arith.constant 0 : i32
    %c0_i32_0 = arith.constant 0 : i32
    %c0_i32_1 = arith.constant 0 : i32
    return %c0_i32, %c0_i32_0 : i32, i32
  }
  func.func @transform_3(%arg0: i32) -> (i32, i32) {
    %c0_i32 = arith.constant 0 : i32
    %c0_i32_0 = arith.constant 0 : i32
    return %arg0, %c0_i32 : i32, i32
  }
}

</mosaic_0001>

<llo_original>
// kernel: tpu_custom_call.1
$region0: #{tpu_custom_call.1}
  #allocation0 [shape = 'u32[]', space=smem, size = 0x4, offset = 0x4, fixed_abs, tag = 'smem constant byte address 0x4 - core index']
  #allocation1 [shape = 'u32[144,128]{1,0:T(1,128)}', space=vmem, size = 0x12000, scoped, tag = 'internal scratch']
  %s0 = inlined_call_operand.hbm [shape: f32[16,32], index: 0, kind: input, shape index: {}]
  %s1 = inlined_call_operand.vmem [shape: f32[1,32], index: 1, kind: input, shape index: {}]
  %s2 = inlined_call_operand.vmem [shape: f32[1,32], index: 2, kind: input, shape index: {}]
  %s3 = inlined_call_operand.hbm [shape: f32[16,32], index: 3, kind: output, shape index: {}]
  %s4 = sld [smem:[#allocation0]]
  $region26: #{tpu_custom_call.1} parent=0
    _
  %s6 = ssub.s32 1, %s4
  %s7 = scalar_select 0, %s6, %s4
  $region1: #{tpu_custom_call.1} parent=0
    #allocation2 [shape = 'u8[8192]{0}', space=vmem, size = 0x2000, scoped, tag = 'input window, operand 0, single buffered']
    #allocation3 [shape = 's32[1]{0}', space=sflag, size = 0x4, scoped, tag = 'scoped memory for tpu_custom_call.1']
    #allocation4 [shape = 's32[1]{0}', space=sflag, size = 0x4, scoped, tag = 'scoped memory for tpu_custom_call.1']
    #allocation5 [shape = 'u8[8192]{0}', space=vmem, size = 0x2000, scoped, tag = 'output window, operand 0, single buffered']
    %8 = vsyncpa [#allocation3], 0
    %9 = vsyncpa [#allocation4], 0
    // Predicated region
    $region2: #{tpu_custom_call.1} parent=1 // pred_check
      _
    $region3: #{tpu_custom_call.1} parent=1 // pred_check_branch
      %11 = sbr.rel (0) target = $region5
    $region4: #{tpu_custom_call.1} parent=1 // pred_region
      %s13 = ssub.s32 256, 256
      %14 = vsyncadd [#allocation3], %s13
      %s15 = sshll.u32 [#allocation2], 4
      %s16 = int_to_ptr.vmem [resolvable:$true] %s15
      %21 = dma.hbm_to_vmem [thread:$0]  %s0, 256, %s16, [#allocation3], 128, 128, 8
    $region5: #{tpu_custom_call.1} parent=1 // pred_fallthru
      _
    // Predicated region
    $region6: #{tpu_custom_call.1} parent=1 // pred_check
      _
    $region7: #{tpu_custom_call.1} parent=1 // pred_check_branch
      %23 = sbr.rel (0) target = $region9
    $region8: #{tpu_custom_call.1} parent=1 // pred_region
      _
    $region9: #{tpu_custom_call.1} parent=1 // pred_fallthru
      _
    // Predicated region
    $region10: #{tpu_custom_call.1} parent=1 // pred_check
      _
    $region11: #{tpu_custom_call.1} parent=1 // pred_check_branch
      %25 = sbr.rel (0) target = $region13
    $region12: #{tpu_custom_call.1} parent=1 // pred_region
      _
    $region13: #{tpu_custom_call.1} parent=1 // pred_fallthru
      _
    // Predicated region
    $region14: #{tpu_custom_call.1} parent=1 // pred_check
      _
    $region15: #{tpu_custom_call.1} parent=1 // pred_check_branch
      %27 = sbr.rel (0) target = $region17
    $region16: #{tpu_custom_call.1} parent=1 // pred_region
      %28 = dma.done [#allocation3], 256
    $region17: #{tpu_custom_call.1} parent=1 // pred_fallthru
      _
    %v29 = vld [vmem:[#allocation2] sm:$0xff]
    %v30 = vld [vmem:[#allocation2 + $0x8] sm:$0xff]
    %vm31 = vcmask 261120
    %v32 = vsel %vm31, %v29, 0.0
    %33 = vadd.xlane.f32.xlu0 %v32
    %v34 = vpop.xlane.xlu0 %33
    %v35 = vsel %vm31, %v30, 0.0
    %36 = vadd.xlane.f32.xlu0 %v35
    %v37 = vpop.xlane.xlu0 %36
    %v38 = vrcp.pop 32.0
    %v39 = vmul.f32 %v34, %v38
    %v40 = vmul.f32 %v37, %v38
    %v41 = vsub.f32 %v29, %v39
    %v42 = vsub.f32 %v30, %v40
    %v43 = vmul.f32 %v41, %v41
    %v44 = vmul.f32 %v42, %v42
    %v45 = vsel %vm31, %v43, 0.0
    %46 = vadd.xlane.f32.xlu0 %v45
    %v47 = vpop.xlane.xlu0 %46
    %v48 = vsel %vm31, %v44, 0.0
    %49 = vadd.xlane.f32.xlu0 %v48
    %v50 = vpop.xlane.xlu0 %49
    %v51 = vmul.f32 %v47, %v38
    %v52 = vmul.f32 %v50, %v38
    %v53 = vadd.f32 %v51, 1e-05
    %v54 = vadd.f32 %v52, 1e-05
    %v55 = vrsqrt.pop %v53
    %v56 = vrsqrt.pop %v54
    %v57 = vmul.f32 %v41, %v55
    %v58 = vmul.f32 %v42, %v56
    %v59 = vld [vmem:[%s1] sm:$0x1]
    %v61 = vlaneseq
    %v62 = vshrl.u32 %v61, 7
    %v63 = vsub.s32 0, %v62
    %v64 = vrot.slane %v59, %v63
    %v66 = vmul.f32 %v57, %v64
    %v67 = vmul.f32 %v58, %v64
    %v68 = vld [vmem:[%s2] sm:$0x1]
    %v70 = vlaneseq
    %v71 = vshrl.u32 %v70, 7
    %v72 = vsub.s32 0, %v71
    %v73 = vrot.slane %v68, %v72
    %v75 = vadd.f32 %v66, %v73
    %v76 = vadd.f32 %v67, %v73
    %77 = vst.msk [vmem:[#allocation5] sm:$0xff] %vm31, %v75
    %78 = vst.msk [vmem:[#allocation5 + $0x8] sm:$0xff] %vm31, %v76
    // Predicated region
    $region18: #{tpu_custom_call.1} parent=1 // pred_check
      _
    $region19: #{tpu_custom_call.1} parent=1 // pred_check_branch
      %80 = sbr.rel (0) target = $region21
    $region20: #{tpu_custom_call.1} parent=1 // pred_region
      %s82 = ssub.s32 256, 256
      %83 = vsyncadd [#allocation4], %s82
      %s84 = sshll.u32 [#allocation5], 4
      %s85 = int_to_ptr.vmem [resolvable:$true] %s84
      %90 = dma.vmem_to_hbm [thread:$0]  %s85, 256, %s3, [#allocation4], 128, 128, 8
    $region21: #{tpu_custom_call.1} parent=1 // pred_fallthru
      _
    // Predicated region
    $region22: #{tpu_custom_call.1} parent=1 // pred_check
      _
    $region23: #{tpu_custom_call.1} parent=1 // pred_check_branch
      %92 = sbr.rel (0) target = $region25
    $region24: #{tpu_custom_call.1} parent=1 // pred_region
      %93 = dma.done [#allocation4], 256
    $region25: #{tpu_custom_call.1} parent=1 // pred_fallthru
      _
    %94 = vsyncpa [#allocation3], 1
    %95 = vsyncpa [#allocation4], 1

</llo_original>
